<compile_context>
chip_gen: v5e
topology: v5e:2x2
jax: 0.10.0
libtpu: 0.0.40
codegen_flags: <defaults>
</compile_context>

<pallas_src>
import jax
import jax.numpy as jnp
from jax.experimental import pallas as pl
from jax.experimental.pallas import tpu as pltpu

LANE = 128  # TPU lane width


def _round_up(n, m):
    return ((n + m - 1) // m) * m


# ---------------------------------------------------------------------------
# Pallas kernel: fused 3-hidden-layer MLP, feature-major (batch on lanes).
#   x_ref : [num_inputs, block_b]  f32
#   w*_ref: [out, in]              bf16   (PyTorch nn.Linear weight layout)
#   b*_ref: [out, 1]               f32
#   o_ref : [num_outputs, block_b] f32
# ---------------------------------------------------------------------------
def _mlp_kernel(x_ref, w1_ref, b1_ref, w2_ref, b2_ref, w3_ref, b3_ref,
                wo_ref, bo_ref, o_ref):
    x = x_ref[...].astype(jnp.bfloat16)

    h = jnp.dot(w1_ref[...], x, preferred_element_type=jnp.float32) + b1_ref[...]
    h = jnp.maximum(h, 0.0)

    h = jnp.dot(w2_ref[...], h.astype(jnp.bfloat16),
                preferred_element_type=jnp.float32) + b2_ref[...]
    h = jnp.maximum(h, 0.0)

    h = jnp.dot(w3_ref[...], h.astype(jnp.bfloat16),
                preferred_element_type=jnp.float32) + b3_ref[...]
    h = jnp.maximum(h, 0.0)

    out = jnp.dot(wo_ref[...], h.astype(jnp.bfloat16),
                  preferred_element_type=jnp.float32) + bo_ref[...]
    o_ref[...] = out.astype(o_ref.dtype)


# ---------------------------------------------------------------------------
# Batch tiling policy: lanes -> multiples of 128, balanced tiles, and >= 2
# grid steps whenever B > 128 so v7x's second TensorCore is used.
# ---------------------------------------------------------------------------
def _choose_tiles(B, block_cap):
    if B <= LANE:
        return 1, LANE                       # one 128-wide tile; padding negligible
    n_tiles = max(2, pl.cdiv(B, block_cap))  # >= 2 steps for megacore split
    n_tiles = min(n_tiles, pl.cdiv(B, LANE))
    block_b = _round_up(pl.cdiv(B, n_tiles), LANE)
    return n_tiles, block_b


# ---------------------------------------------------------------------------
# Wrapper.  params use the PyTorch layout: weights [out, in], biases [out].
# ---------------------------------------------------------------------------
def double_q_learner_forward(x, params, *, block_cap=2048):
    """Forward pass of DoubleQLearnerANN (num_layers=3) as a Pallas kernel.

    x: [B, num_inputs] float32 -> returns [B, num_outputs] float32.
    """
    B, num_inputs = x.shape
    w1, w2, w3, wo = params["w1"], params["w2"], params["w3"], params["wo"]
    b1, b2, b3, bo = params["b1"], params["b2"], params["b3"], params["bo"]
    h1, h2, h3 = w1.shape[0], w2.shape[0], w3.shape[0]
    num_outputs = wo.shape[0]

    n_tiles, block_b = _choose_tiles(B, block_cap)
    Bp = n_tiles * block_b

    # Feature-major activations (batch on lanes); pad batch to the tile grid.
    xt = x.T
    if Bp != B:
        xt = jnp.pad(xt, ((0, 0), (0, Bp - B)))

    # Weights in bf16 (single-pass MXU), biases as [out, 1] f32 (lane-broadcast).
    param_list = [
        w1.astype(jnp.bfloat16), b1.reshape(h1, 1).astype(jnp.float32),
        w2.astype(jnp.bfloat16), b2.reshape(h2, 1).astype(jnp.float32),
        w3.astype(jnp.bfloat16), b3.reshape(h3, 1).astype(jnp.float32),
        wo.astype(jnp.bfloat16), bo.reshape(num_outputs, 1).astype(jnp.float32),
    ]

    def const_spec(a):
        # Whole (tiny) parameter resident in VMEM; constant block index across
        # the grid so it is fetched once.
        return pl.BlockSpec(a.shape, lambda i: (0, 0))

    # Honest (unpadded) cost hint for XLA's scheduler.
    flops = 2 * Bp * (num_inputs * h1 + h1 * h2 + h2 * h3 + h3 * num_outputs)
    bytes_accessed = (int(xt.size) * 4 + Bp * num_outputs * 4
                      + sum(int(a.size) * a.dtype.itemsize for a in param_list))
    cost = pl.CostEstimate(flops=flops, transcendentals=0,
                           bytes_accessed=bytes_accessed)

    out = pl.pallas_call(
        _mlp_kernel,
        out_shape=jax.ShapeDtypeStruct((num_outputs, Bp), x.dtype),
        grid_spec=pltpu.PrefetchScalarGridSpec(
            num_scalar_prefetch=0,
            grid=(n_tiles,),
            in_specs=[
                pl.BlockSpec((num_inputs, block_b), lambda i: (0, i)),  # X tile
                *[const_spec(a) for a in param_list],
            ],
            out_specs=pl.BlockSpec((num_outputs, block_b), lambda i: (0, i)),
        ),
        compiler_params=pltpu.CompilerParams(
            dimension_semantics=("parallel",),   # batch tiles split across TCs (v7x)
        ),
        cost_estimate=cost,
    )(xt, *param_list)

    return out[:, :B].T


# ---------------------------------------------------------------------------
# Deterministic parameter init (xavier-uniform weights, zero biases, matching
# DoubleQLearnerANN.initialize_weights); weights are [out, in] like nn.Linear.
# ---------------------------------------------------------------------------
def init_params(key, num_inputs, neurons, num_outputs):
    def xavier(key, fan_out, fan_in):
        limit = jnp.sqrt(6.0 / (fan_in + fan_out))
        return jax.random.uniform(key, (fan_out, fan_in), jnp.float32,
                                  minval=-limit, maxval=limit)

    k1, k2, k3, k4 = jax.random.split(key, 4)
    return {
        "w1": xavier(k1, neurons[0], num_inputs),
        "b1": jnp.zeros((neurons[0],), jnp.float32),
        "w2": xavier(k2, neurons[1], neurons[0]),
        "b2": jnp.zeros((neurons[1],), jnp.float32),
        "w3": xavier(k3, neurons[2], neurons[1]),
        "b3": jnp.zeros((neurons[2],), jnp.float32),
        "wo": xavier(k4, num_outputs, neurons[2]),
        "bo": jnp.zeros((num_outputs,), jnp.float32),
    }


def reference_forward(x, p):
    h = jnp.maximum(x @ p["w1"].T + p["b1"], 0.0)
    h = jnp.maximum(h @ p["w2"].T + p["b2"], 0.0)
    h = jnp.maximum(h @ p["w3"].T + p["b3"], 0.0)
    return h @ p["wo"].T + p["bo"]


if __name__ == "__main__":
    num_inputs = 8
    num_outputs = 4
    neurons = [32, 32, 32]

    key = jax.random.PRNGKey(0)
    key_x, key_x2, key_p = jax.random.split(key, 3)
    params = init_params(key_p, num_inputs, neurons, num_outputs)

    fwd = jax.jit(double_q_learner_forward)

    # Case 1: small ragged batch (single 128-wide tile, exercises padding path).
    batch = 20
    x = jax.random.normal(key_x, (batch, num_inputs), jnp.float32)
    out = jax.block_until_ready(fwd(x, params))
    ref = reference_forward(x, params)
    assert out.shape == (batch, num_outputs), out.shape
    # bf16 MXU operands -> relaxed tolerance vs. the f32 reference.
    assert jnp.allclose(out, ref, atol=3e-2, rtol=3e-2), "mismatch vs reference (B=20)"

    # Case 2: batch > 128 -> two balanced 128-aligned tiles ("parallel" grid).
    batch2 = 300
    x2 = jax.random.normal(key_x2, (batch2, num_inputs), jnp.float32)
    out2 = jax.block_until_ready(fwd(x2, params))
    ref2 = reference_forward(x2, params)
    assert out2.shape == (batch2, num_outputs), out2.shape
    assert jnp.allclose(out2, ref2, atol=3e-2, rtol=3e-2), "mismatch vs reference (B=300)"

    print("KERNEL_OK")
</pallas_src>

<mosaic_0001>
module attributes {stable_mosaic.version = 11 : i64} {
  func.func @_mlp_kernel(%arg0: i32, %arg1: memref<8x128xf32, #tpu.memory_space<vmem>>, %arg2: memref<32x8xbf16, #tpu.memory_space<vmem>>, %arg3: memref<32x1xf32, #tpu.memory_space<vmem>>, %arg4: memref<32x32xbf16, #tpu.memory_space<vmem>>, %arg5: memref<32x1xf32, #tpu.memory_space<vmem>>, %arg6: memref<32x32xbf16, #tpu.memory_space<vmem>>, %arg7: memref<32x1xf32, #tpu.memory_space<vmem>>, %arg8: memref<4x32xbf16, #tpu.memory_space<vmem>>, %arg9: memref<4x1xf32, #tpu.memory_space<vmem>>, %arg10: memref<4x128xf32, #tpu.memory_space<vmem>>) attributes {dimension_semantics = [#tpu.dimension_semantics<parallel>], iteration_bounds = array<i64: 1>, scalar_prefetch = 0 : i64, scratch_operands = 0 : i64, tpu.core_type = #tpu.core_type<tc>, window_params = [{transform_indices = @transform_0, window_bounds = array<i64: 8, 128>}, {pipeline_mode = #tpu.pipeline_mode<synchronous>, transform_indices = @transform_1, window_bounds = array<i64: 32, 8>}, {pipeline_mode = #tpu.pipeline_mode<synchronous>, transform_indices = @transform_2, window_bounds = array<i64: 32, 1>}, {pipeline_mode = #tpu.pipeline_mode<synchronous>, transform_indices = @transform_3, window_bounds = array<i64: 32, 32>}, {pipeline_mode = #tpu.pipeline_mode<synchronous>, transform_indices = @transform_4, window_bounds = array<i64: 32, 1>}, {pipeline_mode = #tpu.pipeline_mode<synchronous>, transform_indices = @transform_5, window_bounds = array<i64: 32, 32>}, {pipeline_mode = #tpu.pipeline_mode<synchronous>, transform_indices = @transform_6, window_bounds = array<i64: 32, 1>}, {pipeline_mode = #tpu.pipeline_mode<synchronous>, transform_indices = @transform_7, window_bounds = array<i64: 4, 32>}, {pipeline_mode = #tpu.pipeline_mode<synchronous>, transform_indices = @transform_8, window_bounds = array<i64: 4, 1>}, {transform_indices = @transform_9, window_bounds = array<i64: 4, 128>}]} {
    %c0 = arith.constant 0 : index
    %c0_0 = arith.constant 0 : index
    %0 = vector.load %arg1[%c0, %c0_0] : memref<8x128xf32, #tpu.memory_space<vmem>>, vector<8x128xf32>
    %1 = arith.truncf %0 : vector<8x128xf32> to vector<8x128xbf16>
    %c0_1 = arith.constant 0 : index
    %c0_2 = arith.constant 0 : index
    %2 = vector.load %arg2[%c0_1, %c0_2] : memref<32x8xbf16, #tpu.memory_space<vmem>>, vector<32x8xbf16>
    %cst = arith.constant dense<0.000000e+00> : vector<32x128xf32>
    %3 = tpu.matmul %2, %1, %cst {dimension_numbers = #tpu.dot_dimension_numbers<[1], [0], [0], [1], [0, 0, 1, 1], [], []>} : vector<32x8xbf16>, vector<8x128xbf16>, vector<32x128xf32> -> vector<32x128xf32>
    %c0_3 = arith.constant 0 : index
    %c0_4 = arith.constant 0 : index
    %4 = vector.load %arg3[%c0_3, %c0_4] : memref<32x1xf32, #tpu.memory_space<vmem>>, vector<32x1xf32>
    %5 = vector.broadcast %4 : vector<32x1xf32> to vector<32x128xf32>
    %6 = arith.addf %3, %5 : vector<32x128xf32>
    %cst_5 = arith.constant 0.000000e+00 : f32
    %7 = vector.broadcast %cst_5 : f32 to vector<32x128xf32>
    %8 = arith.maximumf %6, %7 : vector<32x128xf32>
    %c0_6 = arith.constant 0 : index
    %c0_7 = arith.constant 0 : index
    %9 = vector.load %arg4[%c0_6, %c0_7] : memref<32x32xbf16, #tpu.memory_space<vmem>>, vector<32x32xbf16>
    %10 = arith.truncf %8 : vector<32x128xf32> to vector<32x128xbf16>
    %cst_8 = arith.constant dense<0.000000e+00> : vector<32x128xf32>
    %11 = tpu.matmul %9, %10, %cst_8 {dimension_numbers = #tpu.dot_dimension_numbers<[1], [0], [0], [1], [0, 0, 1, 1], [], []>} : vector<32x32xbf16>, vector<32x128xbf16>, vector<32x128xf32> -> vector<32x128xf32>
    %c0_9 = arith.constant 0 : index
    %c0_10 = arith.constant 0 : index
    %12 = vector.load %arg5[%c0_9, %c0_10] : memref<32x1xf32, #tpu.memory_space<vmem>>, vector<32x1xf32>
    %13 = vector.broadcast %12 : vector<32x1xf32> to vector<32x128xf32>
    %14 = arith.addf %11, %13 : vector<32x128xf32>
    %cst_11 = arith.constant 0.000000e+00 : f32
    %15 = vector.broadcast %cst_11 : f32 to vector<32x128xf32>
    %16 = arith.maximumf %14, %15 : vector<32x128xf32>
    %c0_12 = arith.constant 0 : index
    %c0_13 = arith.constant 0 : index
    %17 = vector.load %arg6[%c0_12, %c0_13] : memref<32x32xbf16, #tpu.memory_space<vmem>>, vector<32x32xbf16>
    %18 = arith.truncf %16 : vector<32x128xf32> to vector<32x128xbf16>
    %cst_14 = arith.constant dense<0.000000e+00> : vector<32x128xf32>
    %19 = tpu.matmul %17, %18, %cst_14 {dimension_numbers = #tpu.dot_dimension_numbers<[1], [0], [0], [1], [0, 0, 1, 1], [], []>} : vector<32x32xbf16>, vector<32x128xbf16>, vector<32x128xf32> -> vector<32x128xf32>
    %c0_15 = arith.constant 0 : index
    %c0_16 = arith.constant 0 : index
    %20 = vector.load %arg7[%c0_15, %c0_16] : memref<32x1xf32, #tpu.memory_space<vmem>>, vector<32x1xf32>
    %21 = vector.broadcast %20 : vector<32x1xf32> to vector<32x128xf32>
    %22 = arith.addf %19, %21 : vector<32x128xf32>
    %cst_17 = arith.constant 0.000000e+00 : f32
    %23 = vector.broadcast %cst_17 : f32 to vector<32x128xf32>
    %24 = arith.maximumf %22, %23 : vector<32x128xf32>
    %c0_18 = arith.constant 0 : index
    %c0_19 = arith.constant 0 : index
    %25 = vector.load %arg8[%c0_18, %c0_19] : memref<4x32xbf16, #tpu.memory_space<vmem>>, vector<4x32xbf16>
    %26 = arith.truncf %24 : vector<32x128xf32> to vector<32x128xbf16>
    %cst_20 = arith.constant dense<0.000000e+00> : vector<4x128xf32>
    %27 = tpu.matmul %25, %26, %cst_20 {dimension_numbers = #tpu.dot_dimension_numbers<[1], [0], [0], [1], [0, 0, 1, 1], [], []>} : vector<4x32xbf16>, vector<32x128xbf16>, vector<4x128xf32> -> vector<4x128xf32>
    %c0_21 = arith.constant 0 : index
    %c0_22 = arith.constant 0 : index
    %28 = vector.load %arg9[%c0_21, %c0_22] : memref<4x1xf32, #tpu.memory_space<vmem>>, vector<4x1xf32>
    %29 = vector.broadcast %28 : vector<4x1xf32> to vector<4x128xf32>
    %30 = arith.addf %27, %29 : vector<4x128xf32>
    %c0_23 = arith.constant 0 : index
    %c0_24 = arith.constant 0 : index
    %31 = vector.load %arg10[%c0_23, %c0_24] : memref<4x128xf32, #tpu.memory_space<vmem>>, vector<4x128xf32>
    tpu.vector_store %arg10[%c0_23, %c0_24], %30 {strides = array<i32>} : memref<4x128xf32, #tpu.memory_space<vmem>>, vector<4x128xf32>,
    return
  }
  func.func @transform_0(%arg0: i32) -> (i32, i32) {
    %c0_i32 = arith.constant 0 : i32
    %c0_i32_0 = arith.constant 0 : i32
    return %c0_i32, %arg0 : i32, i32
  }
  func.func @transform_1(%arg0: i32) -> (i32, i32) {
    %c0_i32 = arith.constant 0 : i32
    %c0_i32_0 = arith.constant 0 : i32
    %c0_i32_1 = arith.constant 0 : i32
    return %c0_i32, %c0_i32_0 : i32, i32
  }
  func.func @transform_2(%arg0: i32) -> (i32, i32) {
    %c0_i32 = arith.constant 0 : i32
    %c0_i32_0 = arith.constant 0 : i32
    %c0_i32_1 = arith.constant 0 : i32
    return %c0_i32, %c0_i32_0 : i32, i32
  }
  func.func @transform_3(%arg0: i32) -> (i32, i32) {
    %c0_i32 = arith.constant 0 : i32
    %c0_i32_0 = arith.constant 0 : i32
    %c0_i32_1 = arith.constant 0 : i32
    return %c0_i32, %c0_i32_0 : i32, i32
  }
  func.func @transform_4(%arg0: i32) -> (i32, i32) {
    %c0_i32 = arith.constant 0 : i32
    %c0_i32_0 = arith.constant 0 : i32
    %c0_i32_1 = arith.constant 0 : i32
    return %c0_i32, %c0_i32_0 : i32, i32
  }
  func.func @transform_5(%arg0: i32) -> (i32, i32) {
    %c0_i32 = arith.constant 0 : i32
    %c0_i32_0 = arith.constant 0 : i32
    %c0_i32_1 = arith.constant 0 : i32
    return %c0_i32, %c0_i32_0 : i32, i32
  }
  func.func @transform_6(%arg0: i32) -> (i32, i32) {
    %c0_i32 = arith.constant 0 : i32
    %c0_i32_0 = arith.constant 0 : i32
    %c0_i32_1 = arith.constant 0 : i32
    return %c0_i32, %c0_i32_0 : i32, i32
  }
  func.func @transform_7(%arg0: i32) -> (i32, i32) {
    %c0_i32 = arith.constant 0 : i32
    %c0_i32_0 = arith.constant 0 : i32
    %c0_i32_1 = arith.constant 0 : i32
    return %c0_i32, %c0_i32_0 : i32, i32
  }
  func.func @transform_8(%arg0: i32) -> (i32, i32) {
    %c0_i32 = arith.constant 0 : i32
    %c0_i32_0 = arith.constant 0 : i32
    %c0_i32_1 = arith.constant 0 : i32
    return %c0_i32, %c0_i32_0 : i32, i32
  }
  func.func @transform_9(%arg0: i32) -> (i32, i32) {
    %c0_i32 = arith.constant 0 : i32
    %c0_i32_0 = arith.constant 0 : i32
    return %c0_i32, %arg0 : i32, i32
  }
}

</mosaic_0001>

<llo_original>
// kernel: double_q_learner_forward.1
$region0: #{double_q_learner_forward.1}
  #allocation0 [shape = 'u32[]', space=smem, size = 0x4, offset = 0x4, fixed_abs, tag = 'smem constant byte address 0x4 - core index']
  #allocation1 [shape = 'u32[72,128]{1,0:T(1,128)}', space=vmem, size = 0x9000, scoped, tag = 'internal scratch']
  %s0 = inlined_call_operand.vmem [shape: f32[8,128], index: 0, kind: input, shape index: {}]
  %s1 = inlined_call_operand.vmem [shape: bf16[32,8], index: 1, kind: input, shape index: {}]
  %s2 = inlined_call_operand.vmem [shape: f32[32,1], index: 2, kind: input, shape index: {}]
  %s3 = inlined_call_operand.vmem [shape: bf16[32,32], index: 3, kind: input, shape index: {}]
  %s4 = inlined_call_operand.vmem [shape: f32[32,1], index: 4, kind: input, shape index: {}]
  %s5 = inlined_call_operand.vmem [shape: bf16[32,32], index: 5, kind: input, shape index: {}]
  %s6 = inlined_call_operand.vmem [shape: f32[32,1], index: 6, kind: input, shape index: {}]
  %s7 = inlined_call_operand.vmem [shape: bf16[4,32], index: 7, kind: input, shape index: {}]
  %s8 = inlined_call_operand.vmem [shape: f32[4,1], index: 8, kind: input, shape index: {}]
  %s9 = inlined_call_operand.vmem [shape: f32[4,128], index: 9, kind: output, shape index: {}]
  %s10 = sld [smem:[#allocation0]]
  $region46: #{double_q_learner_forward.1} parent=0
    _
  %s12 = ssub.s32 1, %s10
  %s13 = scalar_select 0, %s12, %s10
  // Predicated region
  $region2: #{double_q_learner_forward.1} parent=0 // pred_check
    _
  $region3: #{double_q_learner_forward.1} parent=0 // pred_check_branch
    %15 = sbr.rel (0) target = $region5
  $region4: #{double_q_learner_forward.1} parent=0 // pred_region
    _
  $region5: #{double_q_learner_forward.1} parent=0 // pred_fallthru
    _
  // Predicated region
  $region6: #{double_q_learner_forward.1} parent=0 // pred_check
    _
  $region7: #{double_q_learner_forward.1} parent=0 // pred_check_branch
    %17 = sbr.rel (0) target = $region9
  $region8: #{double_q_learner_forward.1} parent=0 // pred_region
    _
  $region9: #{double_q_learner_forward.1} parent=0 // pred_fallthru
    _
  // Predicated region
  $region10: #{double_q_learner_forward.1} parent=0 // pred_check
    _
  $region11: #{double_q_learner_forward.1} parent=0 // pred_check_branch
    %19 = sbr.rel (0) target = $region13
  $region12: #{double_q_learner_forward.1} parent=0 // pred_region
    _
  $region13: #{double_q_learner_forward.1} parent=0 // pred_fallthru
    _
  // Predicated region
  $region14: #{double_q_learner_forward.1} parent=0 // pred_check
    _
  $region15: #{double_q_learner_forward.1} parent=0 // pred_check_branch
    %21 = sbr.rel (0) target = $region17
  $region16: #{double_q_learner_forward.1} parent=0 // pred_region
    _
  $region17: #{double_q_learner_forward.1} parent=0 // pred_fallthru
    _
  // Predicated region
  $region18: #{double_q_learner_forward.1} parent=0 // pred_check
    _
  $region19: #{double_q_learner_forward.1} parent=0 // pred_check_branch
    %23 = sbr.rel (0) target = $region21
  $region20: #{double_q_learner_forward.1} parent=0 // pred_region
    _
  $region21: #{double_q_learner_forward.1} parent=0 // pred_fallthru
    _
  // Predicated region
  $region22: #{double_q_learner_forward.1} parent=0 // pred_check
    _
  $region23: #{double_q_learner_forward.1} parent=0 // pred_check_branch
    %25 = sbr.rel (0) target = $region25
  $region24: #{double_q_learner_forward.1} parent=0 // pred_region
    _
  $region25: #{double_q_learner_forward.1} parent=0 // pred_fallthru
    _
  // Predicated region
  $region26: #{double_q_learner_forward.1} parent=0 // pred_check
    _
  $region27: #{double_q_learner_forward.1} parent=0 // pred_check_branch
    %27 = sbr.rel (0) target = $region29
  $region28: #{double_q_learner_forward.1} parent=0 // pred_region
    _
  $region29: #{double_q_learner_forward.1} parent=0 // pred_fallthru
    _
  // Predicated region
  $region30: #{double_q_learner_forward.1} parent=0 // pred_check
    _
  $region31: #{double_q_learner_forward.1} parent=0 // pred_check_branch
    %29 = sbr.rel (0) target = $region33
  $region32: #{double_q_learner_forward.1} parent=0 // pred_region
    _
  $region33: #{double_q_learner_forward.1} parent=0 // pred_fallthru
    _
  // Predicated region
  $region34: #{double_q_learner_forward.1} parent=0 // pred_check
    _
  $region35: #{double_q_learner_forward.1} parent=0 // pred_check_branch
    %31 = sbr.rel (0) target = $region37
  $region36: #{double_q_learner_forward.1} parent=0 // pred_region
    _
  $region37: #{double_q_learner_forward.1} parent=0 // pred_fallthru
    _
  %v33 = vld [vmem:[%s0] sm:$0xff]
  %v34 = vpack.c.bf16 %v33, %v33
  %v35 = vld [vmem:[%s1] sm:$0xf]
  %v36 = vld [vmem:[%s1 + $0x4] sm:$0xf]
  %v37 = vld [vmem:[%s1 + $0x8] sm:$0xf]
  %v38 = vld [vmem:[%s1 + $0xc] sm:$0xf]
  %v39 = vld [vmem:[%s2] sm:$0xff]
  %v40 = vld [vmem:[%s2 + $0x8] sm:$0xff]
  %v41 = vld [vmem:[%s2 + $0x10] sm:$0xff]
  %v42 = vld [vmem:[%s2 + $0x18] sm:$0xff]
  %44 = vset.pattern.permute.xlu0 0
  %45 = vperm.xlu0 %44, %v39
  %v46 = vpop.permute.xlu0 %45
  %49 = vset.pattern.permute.xlu0 0
  %50 = vperm.xlu0 %49, %v40
  %v51 = vpop.permute.xlu0 %50
  %54 = vset.pattern.permute.xlu0 0
  %55 = vperm.xlu0 %54, %v41
  %v56 = vpop.permute.xlu0 %55
  %59 = vset.pattern.permute.xlu0 0
  %60 = vperm.xlu0 %59, %v42
  %v61 = vpop.permute.xlu0 %60
  %v67 = vunpack.c.l.b16 %v35
  %v68 = vunpack.c.l.b16 %v36
  %v69 = vunpack.c.l.b16 %v37
  %v70 = vunpack.c.l.b16 %v38
  %v71 = vpack.c.b16 %v68, %v67
  %v72 = vpack.c.b16 %v70, %v69
  %vm73 = vcmask 64512
  %v75 = vsel %vm73, %v71, 0
  %v78 = vsel %vm73, %v72, 0
  %vm80 = vcmask 1043456
  %v82 = vsel %vm80, %v34, 0
  %84 = vmatpush.bf16.msra.mxu0 0
  %85 = vmatpush.bf16.msra.mxu0 0
  %86 = vmatpush.bf16.msra.mxu0 0
  %87 = vmatpush.bf16.msra.mxu0 0
  %88 = vmatpush.bf16.msra.mxu0 0
  %89 = vmatpush.bf16.msra.mxu0 0
  %90 = vmatpush.bf16.msra.mxu0 0
  %91 = vmatpush.bf16.msra.mxu0 %v82
  %92 = vmatmul.bf16.gmra.mxu0 %v75
  %v93 = vpop.f32.mrf.mxu0
  %v94 = vadd.f32 %v46, %v93
  %v95 = vpop.f32.mrf.mxu0
  %v96 = vadd.f32 %v51, %v95
  %97 = vmatmul.bf16.gmra.mxu0 %v78
  %v98 = vpop.f32.mrf.mxu0
  %v99 = vadd.f32 %v56, %v98
  %v100 = vpop.f32.mrf.mxu0
  %v101 = vadd.f32 %v61, %v100
  %102 = vdwg.mxu0
  %v103 = vmax.f32 %v94, 0.0
  %v104 = vmax.f32 %v96, 0.0
  %v105 = vmax.f32 %v99, 0.0
  %v106 = vmax.f32 %v101, 0.0
  %v107 = vld [vmem:[%s3] sm:$0xf]
  %v108 = vld [vmem:[%s3 + $0x4] sm:$0xf]
  %v109 = vld [vmem:[%s3 + $0x8] sm:$0xf]
  %v110 = vld [vmem:[%s3 + $0xc] sm:$0xf]
  %v111 = vpack.c.bf16 %v104, %v103
  %v112 = vpack.c.bf16 %v106, %v105
  %v113 = vld [vmem:[%s4] sm:$0xff]
  %v114 = vld [vmem:[%s4 + $0x8] sm:$0xff]
  %v115 = vld [vmem:[%s4 + $0x10] sm:$0xff]
  %v116 = vld [vmem:[%s4 + $0x18] sm:$0xff]
  %118 = vset.pattern.permute.xlu0 0
  %119 = vperm.xlu0 %118, %v113
  %v120 = vpop.permute.xlu0 %119
  %123 = vset.pattern.permute.xlu0 0
  %124 = vperm.xlu0 %123, %v114
  %v125 = vpop.permute.xlu0 %124
  %128 = vset.pattern.permute.xlu0 0
  %129 = vperm.xlu0 %128, %v115
  %v130 = vpop.permute.xlu0 %129
  %133 = vset.pattern.permute.xlu0 0
  %134 = vperm.xlu0 %133, %v116
  %v135 = vpop.permute.xlu0 %134
  %v141 = vunpack.c.l.b16 %v107
  %v142 = vunpack.c.l.b16 %v108
  %v143 = vunpack.c.l.b16 %v109
  %v144 = vunpack.c.l.b16 %v110
  %v145 = vpack.c.b16 %v142, %v141
  %v146 = vpack.c.b16 %v144, %v143
  %vm147 = vcmask 261120
  %v149 = vsel %vm147, %v145, 0
  %v152 = vsel %vm147, %v146, 0
  %154 = vmatpush.bf16.msra.mxu0 0
  %155 = vmatpush.bf16.msra.mxu0 0
  %156 = vmatpush.bf16.msra.mxu0 0
  %157 = vmatpush.bf16.msra.mxu0 0
  %158 = vmatpush.bf16.msra.mxu0 0
  %159 = vmatpush.bf16.msra.mxu0 0
  %160 = vmatpush.bf16.msra.mxu0 %v112
  %161 = vmatpush.bf16.msra.mxu0 %v111
  %162 = vmatmul.bf16.gmra.mxu0 %v149
  %v163 = vpop.f32.mrf.mxu0
  %v164 = vadd.f32 %v120, %v163
  %v165 = vpop.f32.mrf.mxu0
  %v166 = vadd.f32 %v125, %v165
  %167 = vmatmul.bf16.gmra.mxu0 %v152
  %v168 = vpop.f32.mrf.mxu0
  %v169 = vadd.f32 %v130, %v168
  %v170 = vpop.f32.mrf.mxu0
  %v171 = vadd.f32 %v135, %v170
  %172 = vdwg.mxu0
  %v173 = vmax.f32 %v164, 0.0
  %v174 = vmax.f32 %v166, 0.0
  %v175 = vmax.f32 %v169, 0.0
  %v176 = vmax.f32 %v171, 0.0
  %v177 = vld [vmem:[%s5] sm:$0xf]
  %v178 = vld [vmem:[%s5 + $0x4] sm:$0xf]
  %v179 = vld [vmem:[%s5 + $0x8] sm:$0xf]
  %v180 = vld [vmem:[%s5 + $0xc] sm:$0xf]
  %v181 = vpack.c.bf16 %v174, %v173
  %v182 = vpack.c.bf16 %v176, %v175
  %v183 = vld [vmem:[%s6] sm:$0xff]
  %v184 = vld [vmem:[%s6 + $0x8] sm:$0xff]
  %v185 = vld [vmem:[%s6 + $0x10] sm:$0xff]
  %v186 = vld [vmem:[%s6 + $0x18] sm:$0xff]
  %188 = vset.pattern.permute.xlu0 0
  %189 = vperm.xlu0 %188, %v183
  %v190 = vpop.permute.xlu0 %189
  %193 = vset.pattern.permute.xlu0 0
  %194 = vperm.xlu0 %193, %v184
  %v195 = vpop.permute.xlu0 %194
  %198 = vset.pattern.permute.xlu0 0
  %199 = vperm.xlu0 %198, %v185
  %v200 = vpop.permute.xlu0 %199
  %203 = vset.pattern.permute.xlu0 0
  %204 = vperm.xlu0 %203, %v186
  %v205 = vpop.permute.xlu0 %204
  %v211 = vunpack.c.l.b16 %v177
  %v212 = vunpack.c.l.b16 %v178
  %v213 = vunpack.c.l.b16 %v179
  %v214 = vunpack.c.l.b16 %v180
  %v215 = vpack.c.b16 %v212, %v211
  %v216 = vpack.c.b16 %v214, %v213
  %v218 = vsel %vm147, %v215, 0
  %v221 = vsel %vm147, %v216, 0
  %223 = vmatpush.bf16.msra.mxu0 0
  %224 = vmatpush.bf16.msra.mxu0 0
  %225 = vmatpush.bf16.msra.mxu0 0
  %226 = vmatpush.bf16.msra.mxu0 0
  %227 = vmatpush.bf16.msra.mxu0 0
  %228 = vmatpush.bf16.msra.mxu0 0
  %229 = vmatpush.bf16.msra.mxu0 %v182
  %230 = vmatpush.bf16.msra.mxu0 %v181
  %231 = vmatmul.bf16.gmra.mxu0 %v218
  %v232 = vpop.f32.mrf.mxu0
  %v233 = vadd.f32 %v190, %v232
  %v234 = vpop.f32.mrf.mxu0
  %v235 = vadd.f32 %v195, %v234
  %236 = vmatmul.bf16.gmra.mxu0 %v221
  %v237 = vpop.f32.mrf.mxu0
  %v238 = vadd.f32 %v200, %v237
  %v239 = vpop.f32.mrf.mxu0
  %v240 = vadd.f32 %v205, %v239
  %241 = vdwg.mxu0
  %v242 = vmax.f32 %v233, 0.0
  %v243 = vmax.f32 %v235, 0.0
  %v244 = vmax.f32 %v238, 0.0
  %v245 = vmax.f32 %v240, 0.0
  %v246 = vld [vmem:[%s7] sm:$0x3]
  %v247 = vpack.c.bf16 %v243, %v242
  %v248 = vpack.c.bf16 %v245, %v244
  %v249 = vld [vmem:[%s8] sm:$0xf]
  %251 = vset.pattern.permute.xlu0 0
  %252 = vperm.xlu0 %251, %v249
  %v253 = vpop.permute.xlu0 %252
  %v256 = vsel %vm147, %v246, 0
  %258 = vmatpush.bf16.msra.mxu0 0
  %259 = vmatpush.bf16.msra.mxu0 0
  %260 = vmatpush.bf16.msra.mxu0 0
  %261 = vmatpush.bf16.msra.mxu0 0
  %262 = vmatpush.bf16.msra.mxu0 0
  %263 = vmatpush.bf16.msra.mxu0 0
  %264 = vmatpush.bf16.msra.mxu0 %v248
  %265 = vmatpush.bf16.msra.mxu0 %v247
  %266 = vmatmul.bf16.gmra.mxu0 %v256
  %v267 = vpop.f32.mrf.mxu0
  %v268 = vadd.f32 %v253, %v267
  %v269 = vpop.f32.mrf.mxu0
  %270 = vdwg.mxu0
  %271 = vst [vmem:[%s9] sm:$0xf] %v268
  // Predicated region
  $region38: #{double_q_learner_forward.1} parent=0 // pred_check
    _
  $region39: #{double_q_learner_forward.1} parent=0 // pred_check_branch
    %273 = sbr.rel (0) target = $region41
  $region40: #{double_q_learner_forward.1} parent=0 // pred_region
    _
  $region41: #{double_q_learner_forward.1} parent=0 // pred_fallthru
    _
  // Predicated region
  $region42: #{double_q_learner_forward.1} parent=0 // pred_check
    _
  $region43: #{double_q_learner_forward.1} parent=0 // pred_check_branch
    %275 = sbr.rel (0) target = $region45
  $region44: #{double_q_learner_forward.1} parent=0 // pred_region
    _
  $region45: #{double_q_learner_forward.1} parent=0 // pred_fallthru
    _

</llo_original>
